<compile_context>
chip_gen: v6e
topology: v6e:2x2x1
jax: 0.10.0
libtpu: 0.0.40
codegen_flags: <defaults>
</compile_context>

<pallas_src>
import math
import functools

import jax
import jax.numpy as jnp
from jax.experimental import pallas as pl
from jax.experimental.pallas import tpu as pltpu


def _round_up(a, m):
    return ((a + m - 1) // m) * m


def _node_padding(n, compute_dtype):
    """Padded node count Np and the row/col tile size (tile divides Np)."""
    sub = 16 if compute_dtype == jnp.bfloat16 else 8
    if n <= 256:
        np_ = _round_up(max(n, sub), sub)
        return np_, np_           # single tile == full (padded) array
    tile = 256
    return _round_up(n, tile), tile


def _vmem_limit_bytes(tile, kp, g, h, cd_bytes):
    """Rough resident-set estimate (double-buffered tiles + resident weights)."""
    f32 = 4
    per_step = (tile * tile * cd_bytes        # adj tile
                + 2 * tile * kp * cd_bytes    # xh (contraction) + xh (row) tiles
                + tile * h * f32              # cell state tile
                + tile * h * (cd_bytes + f32))  # new_h + new_c tiles
    resident = (2 * kp * g * cd_bytes + g * f32   # stacked weights + bias
                + tile * g * f32)                  # accumulator scratch
    need = 2 * per_step + 2 * resident + (4 << 20)
    return int(min(max(need, 32 << 20), 64 << 20))


# ---------------------------------------------------------------------------
# Kernel
# ---------------------------------------------------------------------------
def tgc_lstm_cell_kernel(xh_k_ref, xh_i_ref, adj_ref, c_ref,
                         w_gc_ref, w_lin_ref, b_ref,
                         new_h_ref, new_c_ref, acc_ref,
                         *, hidden_size, support_dtype):
    """One (row-tile i, contraction-tile k) grid step.

    xh_k : [TK, Kp]  rows of [x | h] for the contraction columns (compute dtype)
    xh_i : [TM, Kp]  rows of [x | h] for this output row tile
    adj  : [TM, TK]  adjacency tile
    c    : [TM, H]   cell state (f32)
    w_gc : [Kp, G]   graph-conv weights (resident), G = round_up(4H, 128)
    w_lin: [Kp, G]   linear-path weights (resident)
    b    : [1,  G]   pre-summed bias (bgi+bgh+bli+blh), f32
    out  : new_h [TM,H] (compute dtype), new_c [TM,H] (f32)
    acc  : [TM, G]   f32 scratch accumulator over the contraction axis
    """
    f32 = jnp.float32
    k = pl.program_id(1)

    @pl.when(k == 0)
    def _init():
        acc_ref[...] = jnp.zeros_like(acc_ref)

    # Graph-conv path: acc += adj[i, k] @ (xh[k] @ W_gc).
    # support stays in the compute dtype (bf16 on the fast path, f32 otherwise);
    # the adjacency aggregation always accumulates in f32.
    support = jnp.dot(xh_k_ref[...], w_gc_ref[...],
                      preferred_element_type=support_dtype)
    acc_ref[...] += jnp.dot(adj_ref[...], support, preferred_element_type=f32)

    @pl.when(k == pl.num_programs(1) - 1)
    def _finalize():
        h = hidden_size
        # Plain-linear path for this row tile + pre-summed bias.
        lin = jnp.dot(xh_i_ref[...], w_lin_ref[...], preferred_element_type=f32)
        combined = acc_ref[...] + lin + b_ref[...]          # [TM, G], f32

        # Gates are packed densely: cols [0,H)=i, [H,2H)=f, [2H,3H)=o, [3H,4H)=g.
        # sigmoid on the first 3H lanes, tanh on the rest (only [3H,4H) is used).
        lane = jax.lax.broadcasted_iota(jnp.int32, combined.shape, 1)
        act = jnp.where(lane < 3 * h,
                        jax.nn.sigmoid(combined), jnp.tanh(combined))

        i_g = act[:, 0 * h:1 * h]
        f_g = act[:, 1 * h:2 * h]
        o_g = act[:, 2 * h:3 * h]
        g_g = act[:, 3 * h:4 * h]

        c_prev = c_ref[...].astype(f32)
        new_c = f_g * c_prev + i_g * g_g
        new_h = o_g * jnp.tanh(new_c)

        new_h_ref[...] = new_h.astype(new_h_ref.dtype)
        new_c_ref[...] = new_c.astype(new_c_ref.dtype)


# ---------------------------------------------------------------------------
# One-time parameter / adjacency preparation (hoisted out of the step path)
# ---------------------------------------------------------------------------
def pack_params(params, input_size, hidden_size, compute_dtype=jnp.float32):
    """Stack weights into two lane-dense [Kp, G] matrices (graph-conv path and
    linear path) and pre-sum the four biases into one [1, G] f32 vector."""
    I, H = input_size, hidden_size
    G = _round_up(4 * H, 128)
    Kp = _round_up(I + H, 128)
    f32 = jnp.float32

    w_gc = jnp.zeros((Kp, G), f32)
    w_gc = w_gc.at[:I, :4 * H].set(params["wgi"].astype(f32))
    w_gc = w_gc.at[I:I + H, :4 * H].set(params["wgh"].astype(f32))

    w_lin = jnp.zeros((Kp, G), f32)
    w_lin = w_lin.at[:I, :4 * H].set(params["wli"].astype(f32))
    w_lin = w_lin.at[I:I + H, :4 * H].set(params["wlh"].astype(f32))

    b_sum = (params["bgi"] + params["bgh"] + params["bli"] + params["blh"])
    b_all = jnp.zeros((1, G), f32).at[:, :4 * H].set(
        jnp.reshape(b_sum, (1, 4 * H)).astype(f32))

    return w_gc.astype(compute_dtype), w_lin.astype(compute_dtype), b_all


def prepare_adjacency(adj, compute_dtype=jnp.float32):
    """Zero-pad the dense adjacency to [Np, Np] in the compute dtype (once)."""
    n = adj.shape[0]
    np_, _ = _node_padding(n, compute_dtype)
    return jnp.zeros((np_, np_), compute_dtype).at[:n, :n].set(
        adj.astype(compute_dtype))


# ---------------------------------------------------------------------------
# Per-step wrapper
# ---------------------------------------------------------------------------
@functools.partial(jax.jit, static_argnames=("hidden_size", "compute_dtype"))
def tgc_lstm_cell(x, h, c, adj_p, w_gc, w_lin, b_all, *,
                  hidden_size, compute_dtype=jnp.float32):
    """One TGC_LSTM_Cell forward step.

    adj_p / w_gc / w_lin / b_all come from prepare_adjacency / pack_params
    (prepared once, reused every timestep)."""
    N, I = x.shape
    H = hidden_size
    cd = compute_dtype
    f32 = jnp.float32

    G = _round_up(4 * H, 128)
    Kp = _round_up(I + H, 128)
    Np, tile = _node_padding(N, cd)
    assert adj_p.shape == (Np, Np), "adjacency must come from prepare_adjacency"
    assert w_gc.shape == (Kp, G) and w_lin.shape == (Kp, G)

    # Padded [x | h] operand (compute dtype) and f32 cell state.
    xh = jnp.zeros((Np, Kp), cd)
    xh = xh.at[:N, :I].set(x.astype(cd))
    xh = xh.at[:N, I:I + H].set(h.astype(cd))
    c_p = jnp.zeros((Np, H), f32).at[:N, :].set(c.astype(f32))

    n_tiles = Np // tile
    grid = (n_tiles, n_tiles)     # (output row tiles, adjacency contraction tiles)

    cd_bytes = jnp.dtype(cd).itemsize
    vmem_limit = _vmem_limit_bytes(tile, Kp, G, H, cd_bytes)

    kernel = functools.partial(tgc_lstm_cell_kernel,
                               hidden_size=H, support_dtype=cd)

    new_h_p, new_c_p = pl.pallas_call(
        kernel,
        out_shape=(jax.ShapeDtypeStruct((Np, H), cd),      # new_h (bf16 on fast path)
                   jax.ShapeDtypeStruct((Np, H), f32)),     # new_c
        grid=grid,
        in_specs=[
            pl.BlockSpec((tile, Kp), lambda i, k: (k, 0)),    # xh rows (contraction)
            pl.BlockSpec((tile, Kp), lambda i, k: (i, 0)),    # xh rows (this row tile)
            pl.BlockSpec((tile, tile), lambda i, k: (i, k)),  # adjacency tile
            pl.BlockSpec((tile, H), lambda i, k: (i, 0)),     # cell state
            pl.BlockSpec((Kp, G), lambda i, k: (0, 0)),       # graph-conv weights (resident)
            pl.BlockSpec((Kp, G), lambda i, k: (0, 0)),       # linear weights (resident)
            pl.BlockSpec((1, G), lambda i, k: (0, 0)),        # pre-summed bias (resident)
        ],
        out_specs=(
            pl.BlockSpec((tile, H), lambda i, k: (i, 0)),
            pl.BlockSpec((tile, H), lambda i, k: (i, 0)),
        ),
        scratch_shapes=[pltpu.VMEM((tile, G), f32)],
        compiler_params=pltpu.CompilerParams(
            dimension_semantics=("parallel", "arbitrary"),
            vmem_limit_bytes=vmem_limit),
    )(xh, xh, adj_p, c_p, w_gc, w_lin, b_all)

    new_h = new_h_p[:N].astype(x.dtype)
    new_c = new_c_p[:N].astype(x.dtype)
    return new_h, new_c


# ---------------------------------------------------------------------------
# Parameter init / pure-JAX reference (mirror the PyTorch module)
# ---------------------------------------------------------------------------
def init_params(key, input_size, hidden_size):
    out4 = 4 * hidden_size
    keys = jax.random.split(key, 8)

    # GraphConvolution: uniform(-stdv, stdv), stdv = 1/sqrt(out_features)
    stdv_gc = 1.0 / math.sqrt(out4)
    wgi = jax.random.uniform(keys[0], (input_size, out4), jnp.float32,
                             -stdv_gc, stdv_gc)
    bgi = jax.random.uniform(keys[1], (1, out4), jnp.float32, -stdv_gc, stdv_gc)
    wgh = jax.random.uniform(keys[2], (hidden_size, out4), jnp.float32,
                             -stdv_gc, stdv_gc)
    bgh = jax.random.uniform(keys[3], (1, out4), jnp.float32, -stdv_gc, stdv_gc)

    # nn.Linear: uniform(-1/sqrt(fan_in), 1/sqrt(fan_in)); stored as [in, out].
    stdv_li = 1.0 / math.sqrt(input_size)
    wli = jax.random.uniform(keys[4], (input_size, out4), jnp.float32,
                             -stdv_li, stdv_li)
    bli = jax.random.uniform(keys[5], (1, out4), jnp.float32, -stdv_li, stdv_li)

    stdv_lh = 1.0 / math.sqrt(hidden_size)
    wlh = jax.random.uniform(keys[6], (hidden_size, out4), jnp.float32,
                             -stdv_lh, stdv_lh)
    blh = jax.random.uniform(keys[7], (1, out4), jnp.float32, -stdv_lh, stdv_lh)

    return dict(wgi=wgi, bgi=bgi, wgh=wgh, bgh=bgh,
                wli=wli, bli=bli, wlh=wlh, blh=blh)


def reference_forward(x, h, c, adj, params):
    """Pure-JAX reference mirroring the PyTorch module exactly."""
    gi = adj @ (x @ params["wgi"]) + params["bgi"]
    gh = adj @ (h @ params["wgh"]) + params["bgh"]
    li = x @ params["wli"] + params["bli"]
    lh = h @ params["wlh"] + params["blh"]
    combined = gi + gh + li + lh
    i_g, f_g, o_g, g_g = jnp.split(combined, 4, axis=1)
    i_g = jax.nn.sigmoid(i_g)
    f_g = jax.nn.sigmoid(f_g)
    o_g = jax.nn.sigmoid(o_g)
    g_g = jnp.tanh(g_g)
    new_c = f_g * c + i_g * g_g
    new_h = o_g * jnp.tanh(new_c)
    return new_h, new_c


# ---------------------------------------------------------------------------
# Self-test
# ---------------------------------------------------------------------------
if __name__ == "__main__":
    def make_case(key, n, i_sz, h_sz):
        k_x, k_h, k_c, k_adj, k_p = jax.random.split(key, 5)
        x = jax.random.normal(k_x, (n, i_sz), jnp.float32)
        h = jax.random.normal(k_h, (n, h_sz), jnp.float32)
        c = jax.random.normal(k_c, (n, h_sz), jnp.float32)
        adj_raw = (jnp.abs(jax.random.normal(k_adj, (n, n), jnp.float32))
                   + jnp.eye(n))
        adj = adj_raw / jnp.sum(adj_raw, axis=1, keepdims=True)
        params = init_params(k_p, i_sz, h_sz)
        return x, h, c, adj, params

    # ---- Case 1: small graph (single-tile grid), f32 and bf16 paths -------
    N, I, H = 16, 8, 32
    x, h, c, adj, params = make_case(jax.random.PRNGKey(0), N, I, H)
    ref_h, ref_c = reference_forward(x, h, c, adj, params)

    w_gc, w_lin, b_all = pack_params(params, I, H, jnp.float32)
    adj_p = prepare_adjacency(adj, jnp.float32)
    h32, c32 = tgc_lstm_cell(x, h, c, adj_p, w_gc, w_lin, b_all,
                             hidden_size=H, compute_dtype=jnp.float32)
    jax.block_until_ready((h32, c32))
    # Loose-ish tolerance: XLA reference and Mosaic may use different default
    # f32 matmul pass counts on the MXU; real bugs show errors >> 1e-2.
    assert jnp.allclose(h32, ref_h, atol=1e-2, rtol=1e-2), "f32 new_h mismatch"
    assert jnp.allclose(c32, ref_c, atol=1e-2, rtol=1e-2), "f32 new_c mismatch"

    w_gc_bf, w_lin_bf, b_bf = pack_params(params, I, H, jnp.bfloat16)
    adj_bf = prepare_adjacency(adj, jnp.bfloat16)
    hbf, cbf = tgc_lstm_cell(x, h, c, adj_bf, w_gc_bf, w_lin_bf, b_bf,
                             hidden_size=H, compute_dtype=jnp.bfloat16)
    jax.block_until_ready((hbf, cbf))
    assert jnp.allclose(hbf, ref_h, atol=4e-2, rtol=4e-2), "bf16 new_h mismatch"
    assert jnp.allclose(cbf, ref_c, atol=4e-2, rtol=4e-2), "bf16 new_c mismatch"

    # ---- Case 2: larger graph -> multi-tile grid, exercises the k-axis
    # accumulator (Np = 512, 2x2 grid of 256-tiles) --------------------------
    N2, I2, H2 = 300, 8, 32
    x2, h2, c2, adj2, params2 = make_case(jax.random.PRNGKey(1), N2, I2, H2)
    ref_h2, ref_c2 = reference_forward(x2, h2, c2, adj2, params2)

    w_gc2, w_lin2, b2 = pack_params(params2, I2, H2, jnp.float32)
    adj2_p = prepare_adjacency(adj2, jnp.float32)
    h2o, c2o = tgc_lstm_cell(x2, h2, c2, adj2_p, w_gc2, w_lin2, b2,
                             hidden_size=H2, compute_dtype=jnp.float32)
    jax.block_until_ready((h2o, c2o))
    assert jnp.allclose(h2o, ref_h2, atol=1e-2, rtol=1e-2), "tiled new_h mismatch"
    assert jnp.allclose(c2o, ref_c2, atol=1e-2, rtol=1e-2), "tiled new_c mismatch"

    print("KERNEL_OK")
</pallas_src>

<mosaic_0001>
module attributes {stable_mosaic.version = 11 : i64} {
  func.func @tgc_lstm_cell_kernel(%arg0: i32, %arg1: i32, %arg2: memref<16x128xf32, #tpu.memory_space<vmem>>, %arg3: memref<16x128xf32, #tpu.memory_space<vmem>>, %arg4: memref<16x16xf32, #tpu.memory_space<vmem>>, %arg5: memref<16x32xf32, #tpu.memory_space<vmem>>, %arg6: memref<128x128xf32, #tpu.memory_space<vmem>>, %arg7: memref<128x128xf32, #tpu.memory_space<vmem>>, %arg8: memref<1x128xf32, #tpu.memory_space<vmem>>, %arg9: memref<16x32xf32, #tpu.memory_space<vmem>>, %arg10: memref<16x32xf32, #tpu.memory_space<vmem>>, %arg11: memref<16x128xf32, #tpu.memory_space<vmem>>) attributes {dimension_semantics = [#tpu.dimension_semantics<parallel>, #tpu.dimension_semantics<arbitrary>], iteration_bounds = array<i64: 1, 1>, scalar_prefetch = 0 : i64, scratch_operands = 1 : i64, tpu.core_type = #tpu.core_type<tc>, window_params = [{transform_indices = @transform_0, window_bounds = array<i64: 16, 128>}, {transform_indices = @transform_1, window_bounds = array<i64: 16, 128>}, {transform_indices = @transform_2, window_bounds = array<i64: 16, 16>}, {transform_indices = @transform_3, window_bounds = array<i64: 16, 32>}, {pipeline_mode = #tpu.pipeline_mode<synchronous>, transform_indices = @transform_4, window_bounds = array<i64: 128, 128>}, {pipeline_mode = #tpu.pipeline_mode<synchronous>, transform_indices = @transform_5, window_bounds = array<i64: 128, 128>}, {pipeline_mode = #tpu.pipeline_mode<synchronous>, transform_indices = @transform_6, window_bounds = array<i64: 1, 128>}, {transform_indices = @transform_7, window_bounds = array<i64: 16, 32>}, {transform_indices = @transform_8, window_bounds = array<i64: 16, 32>}]} {
    %c0_i32 = arith.constant 0 : i32
    %0 = arith.cmpi eq, %arg1, %c0_i32 : i32
    %1 = arith.extui %0 : i1 to i32
    %c0_i32_0 = arith.constant 0 : i32
    %2 = arith.cmpi ne, %1, %c0_i32_0 : i32
    scf.if %2 {
      %cst_13 = arith.constant 0.000000e+00 : f32
      %14 = vector.broadcast %cst_13 : f32 to vector<16x128xf32>
      %c0_14 = arith.constant 0 : index
      %c0_15 = arith.constant 0 : index
      %15 = vector.load %arg11[%c0_14, %c0_15] : memref<16x128xf32, #tpu.memory_space<vmem>>, vector<16x128xf32>
      tpu.vector_store %arg11[%c0_14, %c0_15], %14 {strides = array<i32>} : memref<16x128xf32, #tpu.memory_space<vmem>>, vector<16x128xf32>,
    } else {
    }
    %c0 = arith.constant 0 : index
    %c0_1 = arith.constant 0 : index
    %3 = vector.load %arg2[%c0, %c0_1] : memref<16x128xf32, #tpu.memory_space<vmem>>, vector<16x128xf32>
    %c0_2 = arith.constant 0 : index
    %c0_3 = arith.constant 0 : index
    %4 = vector.load %arg6[%c0_2, %c0_3] : memref<128x128xf32, #tpu.memory_space<vmem>>, vector<128x128xf32>
    %cst = arith.constant dense<0.000000e+00> : vector<16x128xf32>
    %5 = tpu.matmul %3, %4, %cst {dimension_numbers = #tpu.dot_dimension_numbers<[1], [0], [0], [1], [0, 0, 1, 1], [], []>} : vector<16x128xf32>, vector<128x128xf32>, vector<16x128xf32> -> vector<16x128xf32>
    %c0_4 = arith.constant 0 : index
    %c0_5 = arith.constant 0 : index
    %6 = vector.load %arg11[%c0_4, %c0_5] : memref<16x128xf32, #tpu.memory_space<vmem>>, vector<16x128xf32>
    %c0_6 = arith.constant 0 : index
    %c0_7 = arith.constant 0 : index
    %7 = vector.load %arg4[%c0_6, %c0_7] : memref<16x16xf32, #tpu.memory_space<vmem>>, vector<16x16xf32>
    %cst_8 = arith.constant dense<0.000000e+00> : vector<16x128xf32>
    %8 = tpu.matmul %7, %5, %cst_8 {dimension_numbers = #tpu.dot_dimension_numbers<[1], [0], [0], [1], [0, 0, 1, 1], [], []>} : vector<16x16xf32>, vector<16x128xf32>, vector<16x128xf32> -> vector<16x128xf32>
    %9 = arith.addf %6, %8 : vector<16x128xf32>
    %c0_9 = arith.constant 0 : index
    %c0_10 = arith.constant 0 : index
    %10 = vector.load %arg11[%c0_9, %c0_10] : memref<16x128xf32, #tpu.memory_space<vmem>>, vector<16x128xf32>
    tpu.vector_store %arg11[%c0_9, %c0_10], %9 {strides = array<i32>} : memref<16x128xf32, #tpu.memory_space<vmem>>, vector<16x128xf32>,
    %c0_i32_11 = arith.constant 0 : i32
    %11 = arith.cmpi eq, %arg1, %c0_i32_11 : i32
    %12 = arith.extui %11 : i1 to i32
    %c0_i32_12 = arith.constant 0 : i32
    %13 = arith.cmpi ne, %12, %c0_i32_12 : i32
    scf.if %13 {
      %c0_13 = arith.constant 0 : index
      %c0_14 = arith.constant 0 : index
      %14 = vector.load %arg3[%c0_13, %c0_14] : memref<16x128xf32, #tpu.memory_space<vmem>>, vector<16x128xf32>
      %c0_15 = arith.constant 0 : index
      %c0_16 = arith.constant 0 : index
      %15 = vector.load %arg7[%c0_15, %c0_16] : memref<128x128xf32, #tpu.memory_space<vmem>>, vector<128x128xf32>
      %cst_17 = arith.constant dense<0.000000e+00> : vector<16x128xf32>
      %16 = tpu.matmul %14, %15, %cst_17 {dimension_numbers = #tpu.dot_dimension_numbers<[1], [0], [0], [1], [0, 0, 1, 1], [], []>} : vector<16x128xf32>, vector<128x128xf32>, vector<16x128xf32> -> vector<16x128xf32>
      %c0_18 = arith.constant 0 : index
      %c0_19 = arith.constant 0 : index
      %17 = vector.load %arg11[%c0_18, %c0_19] : memref<16x128xf32, #tpu.memory_space<vmem>>, vector<16x128xf32>
      %18 = arith.addf %17, %16 : vector<16x128xf32>
      %c0_20 = arith.constant 0 : index
      %c0_21 = arith.constant 0 : index
      %19 = vector.load %arg8[%c0_20, %c0_21] : memref<1x128xf32, #tpu.memory_space<vmem>>, vector<1x128xf32>
      %20 = vector.broadcast %19 : vector<1x128xf32> to vector<16x128xf32>
      %21 = arith.addf %18, %20 : vector<16x128xf32>
      %22 = tpu.iota {dimensions = array<i32: 1>} : vector<16x128xi32>
      %c96_i32 = arith.constant 96 : i32
      %23 = vector.broadcast %c96_i32 : i32 to vector<16x128xi32>
      %24 = arith.cmpi slt, %22, %23 : vector<16x128xi32>
      %25 = arith.negf %21 : vector<16x128xf32>
      %26 = math.exp %25 : vector<16x128xf32>
      %cst_22 = arith.constant 1.000000e+00 : f32
      %27 = vector.broadcast %cst_22 : f32 to vector<16x128xf32>
      %28 = arith.addf %27, %26 : vector<16x128xf32>
      %29 = arith.divf %27, %28 : vector<16x128xf32>
      %30 = math.tanh %21 : vector<16x128xf32>
      %31 = arith.select %24, %29, %30 : vector<16x128xi1>, vector<16x128xf32>
      %32 = vector.extract_strided_slice %31 {offsets = [0, 0], sizes = [16, 32], strides = [1, 1]} : vector<16x128xf32> to vector<16x32xf32>
      %33 = vector.extract_strided_slice %31 {offsets = [0, 32], sizes = [16, 32], strides = [1, 1]} : vector<16x128xf32> to vector<16x32xf32>
      %34 = vector.extract_strided_slice %31 {offsets = [0, 64], sizes = [16, 32], strides = [1, 1]} : vector<16x128xf32> to vector<16x32xf32>
      %35 = vector.extract_strided_slice %31 {offsets = [0, 96], sizes = [16, 32], strides = [1, 1]} : vector<16x128xf32> to vector<16x32xf32>
      %c0_23 = arith.constant 0 : index
      %c0_24 = arith.constant 0 : index
      %36 = vector.load %arg5[%c0_23, %c0_24] : memref<16x32xf32, #tpu.memory_space<vmem>>, vector<16x32xf32>
      %37 = arith.mulf %33, %36 : vector<16x32xf32>
      %38 = arith.mulf %32, %35 : vector<16x32xf32>
      %39 = arith.addf %37, %38 : vector<16x32xf32>
      %40 = math.tanh %39 : vector<16x32xf32>
      %41 = arith.mulf %34, %40 : vector<16x32xf32>
      %c0_25 = arith.constant 0 : index
      %c0_26 = arith.constant 0 : index
      %42 = vector.load %arg9[%c0_25, %c0_26] : memref<16x32xf32, #tpu.memory_space<vmem>>, vector<16x32xf32>
      tpu.vector_store %arg9[%c0_25, %c0_26], %41 {strides = array<i32>} : memref<16x32xf32, #tpu.memory_space<vmem>>, vector<16x32xf32>,
      %c0_27 = arith.constant 0 : index
      %c0_28 = arith.constant 0 : index
      %43 = vector.load %arg10[%c0_27, %c0_28] : memref<16x32xf32, #tpu.memory_space<vmem>>, vector<16x32xf32>
      tpu.vector_store %arg10[%c0_27, %c0_28], %39 {strides = array<i32>} : memref<16x32xf32, #tpu.memory_space<vmem>>, vector<16x32xf32>,
    } else {
    }
    return
  }
  func.func @transform_0(%arg0: i32, %arg1: i32) -> (i32, i32) {
    %c0_i32 = arith.constant 0 : i32
    %c0_i32_0 = arith.constant 0 : i32
    return %arg1, %c0_i32 : i32, i32
  }
  func.func @transform_1(%arg0: i32, %arg1: i32) -> (i32, i32) {
    %c0_i32 = arith.constant 0 : i32
    %c0_i32_0 = arith.constant 0 : i32
    return %arg0, %c0_i32 : i32, i32
  }
  func.func @transform_2(%arg0: i32, %arg1: i32) -> (i32, i32) {
    %c0_i32 = arith.constant 0 : i32
    return %arg0, %arg1 : i32, i32
  }
  func.func @transform_3(%arg0: i32, %arg1: i32) -> (i32, i32) {
    %c0_i32 = arith.constant 0 : i32
    %c0_i32_0 = arith.constant 0 : i32
    return %arg0, %c0_i32 : i32, i32
  }
  func.func @transform_4(%arg0: i32, %arg1: i32) -> (i32, i32) {
    %c0_i32 = arith.constant 0 : i32
    %c0_i32_0 = arith.constant 0 : i32
    %c0_i32_1 = arith.constant 0 : i32
    return %c0_i32, %c0_i32_0 : i32, i32
  }
  func.func @transform_5(%arg0: i32, %arg1: i32) -> (i32, i32) {
    %c0_i32 = arith.constant 0 : i32
    %c0_i32_0 = arith.constant 0 : i32
    %c0_i32_1 = arith.constant 0 : i32
    return %c0_i32, %c0_i32_0 : i32, i32
  }
  func.func @transform_6(%arg0: i32, %arg1: i32) -> (i32, i32) {
    %c0_i32 = arith.constant 0 : i32
    %c0_i32_0 = arith.constant 0 : i32
    %c0_i32_1 = arith.constant 0 : i32
    return %c0_i32, %c0_i32_0 : i32, i32
  }
  func.func @transform_7(%arg0: i32, %arg1: i32) -> (i32, i32) {
    %c0_i32 = arith.constant 0 : i32
    %c0_i32_0 = arith.constant 0 : i32
    return %arg0, %c0_i32 : i32, i32
  }
  func.func @transform_8(%arg0: i32, %arg1: i32) -> (i32, i32) {
    %c0_i32 = arith.constant 0 : i32
    %c0_i32_0 = arith.constant 0 : i32
    return %arg0, %c0_i32 : i32, i32
  }
}

</mosaic_0001>

<llo_original>
// kernel: tgc_lstm_cell.1
$region0: #{tgc_lstm_cell.1}
  #allocation0 [shape = 'u32[]', space=smem, size = 0x4, offset = 0x4, fixed_abs, tag = 'smem constant byte address 0x4 - core index']
  #allocation1 [shape = 'u32[144,128]{1,0:T(1,128)}', space=vmem, size = 0x12000, scoped, tag = 'internal scratch']
  #allocation2 [shape = 'f32[16,128]{1,0:T(8,128)}', space=vmem, size = 0x2000, scoped, tag = 'scratch operand']
  %s0 = inlined_call_operand.vmem [shape: f32[16,128], index: 0, kind: input, shape index: {}, may-alias: {0,1}]
  %s1 = inlined_call_operand.vmem [shape: f32[16,128], index: 1, kind: input, shape index: {}, may-alias: {0,1}]
  %s2 = inlined_call_operand.vmem [shape: f32[16,16], index: 2, kind: input, shape index: {}]
  %s3 = inlined_call_operand.vmem [shape: f32[16,32], index: 3, kind: input, shape index: {}]
  %s4 = inlined_call_operand.vmem [shape: f32[128,128], index: 4, kind: input, shape index: {}]
  %s5 = inlined_call_operand.hbm [shape: f32[128,128], index: 5, kind: input, shape index: {}]
  %s6 = inlined_call_operand.vmem [shape: f32[1,128], index: 6, kind: input, shape index: {}]
  %s7 = inlined_call_operand.hbm [shape: f32[16,32], index: 7, kind: output, shape index: {0}]
  %s8 = inlined_call_operand.hbm [shape: f32[16,32], index: 8, kind: output, shape index: {1}]
  %9 = xla_tuple %s7, %s8
  %s10 = sld [smem:[#allocation0]]
  $region58: #{tgc_lstm_cell.1} parent=0
    _
  %s12 = ssub.s32 1, %s10
  %s13 = scalar_select 0, %s12, %s10
  $region1: #{tgc_lstm_cell.1} parent=0
    #allocation3 [shape = 'u8[65536]{0}', space=vmem, size = 0x10000, scoped, tag = 'input window, operand 5, single buffered']
    #allocation4 [shape = 's32[1]{0}', space=sflag, size = 0x4, scoped, tag = 'scoped memory for tgc_lstm_cell.1']
    #allocation5 [shape = 's32[1]{0}', space=sflag, size = 0x4, scoped, tag = 'scoped memory for tgc_lstm_cell.1']
    #allocation6 [shape = 'u8[8192]{0}', space=vmem, size = 0x2000, scoped, tag = 'output window, operand 0, single buffered']
    #allocation7 [shape = 'u8[8192]{0}', space=vmem, size = 0x2000, scoped, tag = 'output window, operand 1, single buffered']
    #allocation8 [shape = 's32[1]{0}', space=sflag, size = 0x4, scoped, tag = 'scoped memory for tgc_lstm_cell.1']
    %14 = vsyncpa [#allocation4], 0
    %15 = vsyncpa [#allocation5], 0
    %16 = vsyncpa [#allocation8], 0
    // Predicated region
    $region2: #{tgc_lstm_cell.1} parent=1 // pred_check
      _
    $region3: #{tgc_lstm_cell.1} parent=1 // pred_check_branch
      %18 = sbr.rel (0) target = $region5
    $region4: #{tgc_lstm_cell.1} parent=1 // pred_region
      _
    $region5: #{tgc_lstm_cell.1} parent=1 // pred_fallthru
      _
    // Predicated region
    $region6: #{tgc_lstm_cell.1} parent=1 // pred_check
      _
    $region7: #{tgc_lstm_cell.1} parent=1 // pred_check_branch
      %20 = sbr.rel (0) target = $region9
    $region8: #{tgc_lstm_cell.1} parent=1 // pred_region
      _
    $region9: #{tgc_lstm_cell.1} parent=1 // pred_fallthru
      _
    // Predicated region
    $region10: #{tgc_lstm_cell.1} parent=1 // pred_check
      _
    $region11: #{tgc_lstm_cell.1} parent=1 // pred_check_branch
      %22 = sbr.rel (0) target = $region13
    $region12: #{tgc_lstm_cell.1} parent=1 // pred_region
      _
    $region13: #{tgc_lstm_cell.1} parent=1 // pred_fallthru
      _
    // Predicated region
    $region14: #{tgc_lstm_cell.1} parent=1 // pred_check
      _
    $region15: #{tgc_lstm_cell.1} parent=1 // pred_check_branch
      %24 = sbr.rel (0) target = $region17
    $region16: #{tgc_lstm_cell.1} parent=1 // pred_region
      _
    $region17: #{tgc_lstm_cell.1} parent=1 // pred_fallthru
      _
    // Predicated region
    $region18: #{tgc_lstm_cell.1} parent=1 // pred_check
      _
    $region19: #{tgc_lstm_cell.1} parent=1 // pred_check_branch
      %26 = sbr.rel (0) target = $region21
    $region20: #{tgc_lstm_cell.1} parent=1 // pred_region
      _
    $region21: #{tgc_lstm_cell.1} parent=1 // pred_fallthru
      _
    // Predicated region
    $region22: #{tgc_lstm_cell.1} parent=1 // pred_check
      _
    $region23: #{tgc_lstm_cell.1} parent=1 // pred_check_branch
      %28 = sbr.rel (0) target = $region25
    $region24: #{tgc_lstm_cell.1} parent=1 // pred_region
      %s30 = ssub.s32 2048, 2048
      %31 = vsyncadd [#allocation4], %s30
      %s32 = sshll.u32 [#allocation3], 4
      %s33 = int_to_ptr.vmem [resolvable:$true] %s32
      %38 = dma.hbm_to_vmem [thread:$0]  %s5, 2048, %s33, [#allocation4], 128, 128, 8
    $region25: #{tgc_lstm_cell.1} parent=1 // pred_fallthru
      _
    // Predicated region
    $region26: #{tgc_lstm_cell.1} parent=1 // pred_check
      _
    $region27: #{tgc_lstm_cell.1} parent=1 // pred_check_branch
      %40 = sbr.rel (0) target = $region29
    $region28: #{tgc_lstm_cell.1} parent=1 // pred_region
      _
    $region29: #{tgc_lstm_cell.1} parent=1 // pred_fallthru
      _
    // Predicated region
    $region30: #{tgc_lstm_cell.1} parent=1 // pred_check
      _
    $region31: #{tgc_lstm_cell.1} parent=1 // pred_check_branch
      %42 = sbr.rel (0) target = $region33
    $region32: #{tgc_lstm_cell.1} parent=1 // pred_region
      %43 = dma.done [#allocation4], 2048
    $region33: #{tgc_lstm_cell.1} parent=1 // pred_fallthru
      _
    %p44 = scmp.eq.s32.totalorder 0, 0
    // Predicated region
    $region34: #{tgc_lstm_cell.1} parent=1 // pred_check
      %p45 = pneg %p44
    $region35: #{tgc_lstm_cell.1} parent=1 // pred_check_branch
      %47 = sbr.rel (%p45) target = $region37
    $region36: #{tgc_lstm_cell.1} parent=1 // pred_region
      %48 = vst [vmem:[#allocation2] sm:$0xff] 0.0
      %49 = vst [vmem:[#allocation2 + $0x8] sm:$0xff] 0.0
    $region37: #{tgc_lstm_cell.1} parent=1 // pred_fallthru
      _
    %v50 = vld [vmem:[%s0] sm:$0xff]
    %v51 = vld [vmem:[%s0 + $0x8] sm:$0xff]
    %v52 = vld [vmem:[%s4] sm:$0xff]
    %v53 = vld [vmem:[%s4 + $0x8] sm:$0xff]
    %v54 = vld [vmem:[%s4 + $0x10] sm:$0xff]
    %v55 = vld [vmem:[%s4 + $0x18] sm:$0xff]
    %v56 = vld [vmem:[%s4 + $0x20] sm:$0xff]
    %v57 = vld [vmem:[%s4 + $0x28] sm:$0xff]
    %v58 = vld [vmem:[%s4 + $0x30] sm:$0xff]
    %v59 = vld [vmem:[%s4 + $0x38] sm:$0xff]
    %v60 = vld [vmem:[%s4 + $0x40] sm:$0xff]
    %v61 = vld [vmem:[%s4 + $0x48] sm:$0xff]
    %v62 = vld [vmem:[%s4 + $0x50] sm:$0xff]
    %v63 = vld [vmem:[%s4 + $0x58] sm:$0xff]
    %v64 = vld [vmem:[%s4 + $0x60] sm:$0xff]
    %v65 = vld [vmem:[%s4 + $0x68] sm:$0xff]
    %v66 = vld [vmem:[%s4 + $0x70] sm:$0xff]
    %v67 = vld [vmem:[%s4 + $0x78] sm:$0xff]
    %68 = vmatprep.subr.mxu0 0.0
    %69 = vmatpush1.msra.mxu0 %v67
    %70 = vmatprep.subr.mxu0 0.0
    %71 = vmatpush1.msra.mxu0 %v66
    %72 = vmatprep.subr.mxu0 0.0
    %73 = vmatpush1.msra.mxu0 %v65
    %74 = vmatprep.subr.mxu0 0.0
    %75 = vmatpush1.msra.mxu0 %v64
    %76 = vmatprep.subr.mxu0 0.0
    %77 = vmatpush1.msra.mxu0 %v63
    %78 = vmatprep.subr.mxu0 0.0
    %79 = vmatpush1.msra.mxu0 %v62
    %80 = vmatprep.subr.mxu0 0.0
    %81 = vmatpush1.msra.mxu0 %v61
    %82 = vmatprep.subr.mxu0 0.0
    %83 = vmatpush1.msra.mxu0 %v60
    %84 = vmatprep.subr.mxu0 0.0
    %85 = vmatpush1.msra.mxu0 %v59
    %86 = vmatprep.subr.mxu0 0.0
    %87 = vmatpush1.msra.mxu0 %v58
    %88 = vmatprep.subr.mxu0 0.0
    %89 = vmatpush1.msra.mxu0 %v57
    %90 = vmatprep.subr.mxu0 0.0
    %91 = vmatpush1.msra.mxu0 %v56
    %92 = vmatprep.subr.mxu0 0.0
    %93 = vmatpush1.msra.mxu0 %v55
    %94 = vmatprep.subr.mxu0 0.0
    %95 = vmatpush1.msra.mxu0 %v54
    %96 = vmatprep.subr.mxu0 0.0
    %97 = vmatpush1.msra.mxu0 %v53
    %98 = vmatprep.subr.mxu0 0.0
    %99 = vmatpush1.msra.mxu0 %v52
    %100 = vmatprep.subr.mxu0 0.0
    %101 = vmatpush2.msra.mxu0 0.0
    %102 = vmatprep.subr.mxu0 0.0
    %103 = vmatpush2.msra.mxu0 0.0
    %104 = vmatprep.subr.mxu0 0.0
    %105 = vmatpush2.msra.mxu0 0.0
    %106 = vmatprep.subr.mxu0 0.0
    %107 = vmatpush2.msra.mxu0 0.0
    %108 = vmatprep.subr.mxu0 0.0
    %109 = vmatpush2.msra.mxu0 0.0
    %110 = vmatprep.subr.mxu0 0.0
    %111 = vmatpush2.msra.mxu0 0.0
    %112 = vmatprep.subr.mxu0 0.0
    %113 = vmatpush2.msra.mxu0 0.0
    %114 = vmatprep.subr.mxu0 0.0
    %115 = vmatpush2.msra.mxu0 0.0
    %116 = vmatprep.subr.mxu0 0.0
    %117 = vmatpush2.msra.mxu0 0.0
    %118 = vmatprep.subr.mxu0 0.0
    %119 = vmatpush2.msra.mxu0 0.0
    %120 = vmatprep.subr.mxu0 0.0
    %121 = vmatpush2.msra.mxu0 0.0
    %122 = vmatprep.subr.mxu0 0.0
    %123 = vmatpush2.msra.mxu0 0.0
    %124 = vmatprep.subr.mxu0 0.0
    %125 = vmatpush2.msra.mxu0 0.0
    %126 = vmatprep.subr.mxu0 0.0
    %127 = vmatpush2.msra.mxu0 0.0
    %128 = vmatprep.subr.mxu0 0.0
    %129 = vmatpush2.msra.mxu0 0.0
    %130 = vmatprep.subr.mxu0 0.0
    %131 = vmatpush2.msra.mxu0 0.0
    %132 = vmatprep.mubr.f32.mxu0 0.0
    %133 = vmatmul.mubr.f32.gmra.mxu0 %v50
    %v134 = vpop.f32.mrf.mxu0
    %v135 = vadd.f32 0.0, %v134
    %v136 = vpop.f32.mrf.mxu0
    %137 = vmatprep.mubr.f32.mxu0 0.0
    %138 = vmatmul.mubr.f32.gmra.mxu0 %v51
    %v139 = vpop.f32.mrf.mxu0
    %v140 = vadd.f32 0.0, %v139
    %v141 = vpop.f32.mrf.mxu0
    %142 = vdwg.mxu0
    %v143 = vld [vmem:[#allocation2] sm:$0xff]
    %v144 = vld [vmem:[#allocation2 + $0x8] sm:$0xff]
    %v145 = vld [vmem:[%s2] sm:$0xff]
    %v146 = vld [vmem:[%s2 + $0x8] sm:$0xff]
    %vm147 = vcmask 130048
    %v149 = vsel %vm147, %v145, 0
    %v152 = vsel %vm147, %v146, 0
    %154 = vmatprep.subr.mxu0 0.0
    %155 = vmatpush1.msra.mxu0 0.0
    %156 = vmatprep.subr.mxu0 0.0
    %157 = vmatpush1.msra.mxu0 0.0
    %158 = vmatprep.subr.mxu0 0.0
    %159 = vmatpush1.msra.mxu0 0.0
    %160 = vmatprep.subr.mxu0 0.0
    %161 = vmatpush1.msra.mxu0 0.0
    %162 = vmatprep.subr.mxu0 0.0
    %163 = vmatpush1.msra.mxu0 0.0
    %164 = vmatprep.subr.mxu0 0.0
    %165 = vmatpush1.msra.mxu0 0.0
    %166 = vmatprep.subr.mxu0 0.0
    %167 = vmatpush1.msra.mxu0 0.0
    %168 = vmatprep.subr.mxu0 0.0
    %169 = vmatpush1.msra.mxu0 0.0
    %170 = vmatprep.subr.mxu0 0.0
    %171 = vmatpush1.msra.mxu0 0.0
    %172 = vmatprep.subr.mxu0 0.0
    %173 = vmatpush1.msra.mxu0 0.0
    %174 = vmatprep.subr.mxu0 0.0
    %175 = vmatpush1.msra.mxu0 0.0
    %176 = vmatprep.subr.mxu0 0.0
    %177 = vmatpush1.msra.mxu0 0.0
    %178 = vmatprep.subr.mxu0 0.0
    %179 = vmatpush1.msra.mxu0 0.0
    %180 = vmatprep.subr.mxu0 0.0
    %181 = vmatpush1.msra.mxu0 0.0
    %182 = vmatprep.subr.mxu0 0.0
    %183 = vmatpush1.msra.mxu0 %v140
    %184 = vmatprep.subr.mxu0 0.0
    %185 = vmatpush1.msra.mxu0 %v135
    %186 = vmatprep.subr.mxu0 0.0
    %187 = vmatpush2.msra.mxu0 0.0
    %188 = vmatprep.subr.mxu0 0.0
    %189 = vmatpush2.msra.mxu0 0.0
    %190 = vmatprep.subr.mxu0 0.0
    %191 = vmatpush2.msra.mxu0 0.0
    %192 = vmatprep.subr.mxu0 0.0
    %193 = vmatpush2.msra.mxu0 0.0
    %194 = vmatprep.subr.mxu0 0.0
    %195 = vmatpush2.msra.mxu0 0.0
    %196 = vmatprep.subr.mxu0 0.0
    %197 = vmatpush2.msra.mxu0 0.0
    %198 = vmatprep.subr.mxu0 0.0
    %199 = vmatpush2.msra.mxu0 0.0
    %200 = vmatprep.subr.mxu0 0.0
    %201 = vmatpush2.msra.mxu0 0.0
    %202 = vmatprep.subr.mxu0 0.0
    %203 = vmatpush2.msra.mxu0 0.0
    %204 = vmatprep.subr.mxu0 0.0
    %205 = vmatpush2.msra.mxu0 0.0
    %206 = vmatprep.subr.mxu0 0.0
    %207 = vmatpush2.msra.mxu0 0.0
    %208 = vmatprep.subr.mxu0 0.0
    %209 = vmatpush2.msra.mxu0 0.0
    %210 = vmatprep.subr.mxu0 0.0
    %211 = vmatpush2.msra.mxu0 0.0
    %212 = vmatprep.subr.mxu0 0.0
    %213 = vmatpush2.msra.mxu0 0.0
    %214 = vmatprep.subr.mxu0 0.0
    %215 = vmatpush2.msra.mxu0 0.0
    %216 = vmatprep.subr.mxu0 0.0
    %217 = vmatpush2.msra.mxu0 0.0
    %218 = vmatprep.mubr.f32.mxu0 0.0
    %219 = vmatmul.mubr.f32.gmra.mxu0 %v149
    %v220 = vpop.f32.mrf.mxu0
    %v221 = vadd.f32 0.0, %v220
    %v222 = vpop.f32.mrf.mxu0
    %223 = vmatprep.mubr.f32.mxu0 0.0
    %224 = vmatmul.mubr.f32.gmra.mxu0 %v152
    %v225 = vpop.f32.mrf.mxu0
    %v226 = vadd.f32 0.0, %v225
    %v227 = vpop.f32.mrf.mxu0
    %228 = vdwg.mxu0
    %v229 = vadd.f32 %v143, %v221
    %v230 = vadd.f32 %v144, %v226
    %231 = vst [vmem:[#allocation2] sm:$0xff] %v229
    %232 = vst [vmem:[#allocation2 + $0x8] sm:$0xff] %v230
    // Predicated region
    $region38: #{tgc_lstm_cell.1} parent=1 // pred_check
      %p233 = pneg %p44
    $region39: #{tgc_lstm_cell.1} parent=1 // pred_check_branch
      %235 = sbr.rel (%p233) target = $region41
    $region40: #{tgc_lstm_cell.1} parent=1 // pred_region
      %v236 = vld [vmem:[%s1] sm:$0xff]
      %v237 = vld [vmem:[%s1 + $0x8] sm:$0xff]
      %v238 = vld [vmem:[#allocation3] sm:$0xff]
      %v239 = vld [vmem:[#allocation3 + $0x8] sm:$0xff]
      %v240 = vld [vmem:[#allocation3 + $0x10] sm:$0xff]
      %v241 = vld [vmem:[#allocation3 + $0x18] sm:$0xff]
      %v242 = vld [vmem:[#allocation3 + $0x20] sm:$0xff]
      %v243 = vld [vmem:[#allocation3 + $0x28] sm:$0xff]
      %v244 = vld [vmem:[#allocation3 + $0x30] sm:$0xff]
      %v245 = vld [vmem:[#allocation3 + $0x38] sm:$0xff]
      %v246 = vld [vmem:[#allocation3 + $0x40] sm:$0xff]
      %v247 = vld [vmem:[#allocation3 + $0x48] sm:$0xff]
      %v248 = vld [vmem:[#allocation3 + $0x50] sm:$0xff]
      %v249 = vld [vmem:[#allocation3 + $0x58] sm:$0xff]
      %v250 = vld [vmem:[#allocation3 + $0x60] sm:$0xff]
      %v251 = vld [vmem:[#allocation3 + $0x68] sm:$0xff]
      %v252 = vld [vmem:[#allocation3 + $0x70] sm:$0xff]
      %v253 = vld [vmem:[#allocation3 + $0x78] sm:$0xff]
      %254 = vmatprep.subr.mxu0 0.0
      %255 = vmatpush1.msra.mxu0 %v253
      %256 = vmatprep.subr.mxu0 0.0
      %257 = vmatpush1.msra.mxu0 %v252
      %258 = vmatprep.subr.mxu0 0.0
      %259 = vmatpush1.msra.mxu0 %v251
      %260 = vmatprep.subr.mxu0 0.0
      %261 = vmatpush1.msra.mxu0 %v250
      %262 = vmatprep.subr.mxu0 0.0
      %263 = vmatpush1.msra.mxu0 %v249
      %264 = vmatprep.subr.mxu0 0.0
      %265 = vmatpush1.msra.mxu0 %v248
      %266 = vmatprep.subr.mxu0 0.0
      %267 = vmatpush1.msra.mxu0 %v247
      %268 = vmatprep.subr.mxu0 0.0
      %269 = vmatpush1.msra.mxu0 %v246
      %270 = vmatprep.subr.mxu0 0.0
      %271 = vmatpush1.msra.mxu0 %v245
      %272 = vmatprep.subr.mxu0 0.0
      %273 = vmatpush1.msra.mxu0 %v244
      %274 = vmatprep.subr.mxu0 0.0
      %275 = vmatpush1.msra.mxu0 %v243
      %276 = vmatprep.subr.mxu0 0.0
      %277 = vmatpush1.msra.mxu0 %v242
      %278 = vmatprep.subr.mxu0 0.0
      %279 = vmatpush1.msra.mxu0 %v241
      %280 = vmatprep.subr.mxu0 0.0
      %281 = vmatpush1.msra.mxu0 %v240
      %282 = vmatprep.subr.mxu0 0.0
      %283 = vmatpush1.msra.mxu0 %v239
      %284 = vmatprep.subr.mxu0 0.0
      %285 = vmatpush1.msra.mxu0 %v238
      %286 = vmatprep.subr.mxu0 0.0
      %287 = vmatpush2.msra.mxu0 0.0
      %288 = vmatprep.subr.mxu0 0.0
      %289 = vmatpush2.msra.mxu0 0.0
      %290 = vmatprep.subr.mxu0 0.0
      %291 = vmatpush2.msra.mxu0 0.0
      %292 = vmatprep.subr.mxu0 0.0
      %293 = vmatpush2.msra.mxu0 0.0
      %294 = vmatprep.subr.mxu0 0.0
      %295 = vmatpush2.msra.mxu0 0.0
      %296 = vmatprep.subr.mxu0 0.0
      %297 = vmatpush2.msra.mxu0 0.0
      %298 = vmatprep.subr.mxu0 0.0
      %299 = vmatpush2.msra.mxu0 0.0
      %300 = vmatprep.subr.mxu0 0.0
      %301 = vmatpush2.msra.mxu0 0.0
      %302 = vmatprep.subr.mxu0 0.0
      %303 = vmatpush2.msra.mxu0 0.0
      %304 = vmatprep.subr.mxu0 0.0
      %305 = vmatpush2.msra.mxu0 0.0
      %306 = vmatprep.subr.mxu0 0.0
      %307 = vmatpush2.msra.mxu0 0.0
      %308 = vmatprep.subr.mxu0 0.0
      %309 = vmatpush2.msra.mxu0 0.0
      %310 = vmatprep.subr.mxu0 0.0
      %311 = vmatpush2.msra.mxu0 0.0
      %312 = vmatprep.subr.mxu0 0.0
      %313 = vmatpush2.msra.mxu0 0.0
      %314 = vmatprep.subr.mxu0 0.0
      %315 = vmatpush2.msra.mxu0 0.0
      %316 = vmatprep.subr.mxu0 0.0
      %317 = vmatpush2.msra.mxu0 0.0
      %318 = vmatprep.mubr.f32.mxu0 0.0
      %319 = vmatmul.mubr.f32.gmra.mxu0 %v236
      %v320 = vpop.f32.mrf.mxu0
      %v321 = vadd.f32 0.0, %v320
      %v322 = vpop.f32.mrf.mxu0
      %323 = vmatprep.mubr.f32.mxu0 0.0
      %324 = vmatmul.mubr.f32.gmra.mxu0 %v237
      %v325 = vpop.f32.mrf.mxu0
      %v326 = vadd.f32 0.0, %v325
      %v327 = vpop.f32.mrf.mxu0
      %328 = vdwg.mxu0
      %v329 = vld [vmem:[#allocation2] sm:$0xff]
      %v330 = vld [vmem:[#allocation2 + $0x8] sm:$0xff]
      %v331 = vadd.f32 %v329, %v321
      %v332 = vadd.f32 %v330, %v326
      %v333 = vld [vmem:[%s6] sm:$0x1]
      %v335 = vlaneseq
      %v336 = vshrl.u32 %v335, 7
      %v337 = vsub.s32 0, %v336
      %v338 = vrot.slane %v333, %v337
      %v340 = vadd.f32 %v331, %v338
      %v341 = vadd.f32 %v332, %v338
      %v342 = vlaneseq
      %v343 = vand.u32 %v342, 127
      %vm344 = vcmp.lt.s32.totalorder %v343, 96
      %v345 = vxor.u32 %v340, 2147483648
      %v346 = vxor.u32 %v341, 2147483648
      %v347 = vmul.f32 %v345, 1.442695
      %v348 = vpow.pop %v347
      %v349 = vmul.f32 %v346, 1.442695
      %v350 = vpow.pop %v349
      %v351 = vadd.f32 %v348, 1.0
      %v352 = vadd.f32 %v350, 1.0
      %v353 = vrcp.pop %v351
      %v354 = vmul.f32 1.0, %v353
      %v355 = vrcp.pop %v352
      %v356 = vmul.f32 1.0, %v355
      %v357 = vtanh.pop %v340
      %v358 = vtanh.pop %v341
      %v359 = vsel %vm344, %v354, %v357
      %v360 = vsel %vm344, %v356, %v358
      %v361 = vld [vmem:[%s3] sm:$0xff]
      %v362 = vld [vmem:[%s3 + $0x8] sm:$0xff]
      %365 = vrot.lane.b32.xlu0 %v361, 32
      %v366 = vpop.permute.xlu0 %365
      %367 = vrot.lane.b32.xlu0 %v362, 32
      %v368 = vpop.permute.xlu0 %367
      %v371 = vmul.f32 %v359, %v366
      %v372 = vmul.f32 %v360, %v368
      %375 = vrot.lane.b32.xlu0 %v359, 32
      %v376 = vpop.permute.xlu0 %375
      %377 = vrot.lane.b32.xlu0 %v360, 32
      %v378 = vpop.permute.xlu0 %377
      %v381 = vmul.f32 %v359, %v376
      %v382 = vmul.f32 %v360, %v378
      %385 = vrot.lane.b32.xlu0 %v381, 32
      %v386 = vpop.permute.xlu0 %385
      %387 = vrot.lane.b32.xlu0 %v382, 32
      %v388 = vpop.permute.xlu0 %387
      %v391 = vadd.f32 %v371, %v386
      %v392 = vadd.f32 %v372, %v388
      %v393 = vtanh.pop %v391
      %v394 = vtanh.pop %v392
      %397 = vrot.lane.b32.xlu0 %v393, 32
      %v398 = vpop.permute.xlu0 %397
      %399 = vrot.lane.b32.xlu0 %v394, 32
      %v400 = vpop.permute.xlu0 %399
      %v403 = vmul.f32 %v359, %v398
      %v404 = vmul.f32 %v360, %v400
      %407 = vrot.lane.b32.xlu0 %v403, 64
      %v408 = vpop.permute.xlu0 %407
      %409 = vrot.lane.b32.xlu0 %v404, 64
      %v410 = vpop.permute.xlu0 %409
      %vm413 = vcmask 261120
      %414 = vst.msk [vmem:[#allocation6] sm:$0xff] %vm413, %v408
      %415 = vst.msk [vmem:[#allocation6 + $0x8] sm:$0xff] %vm413, %v410
      %418 = vrot.lane.b32.xlu0 %v391, 96
      %v419 = vpop.permute.xlu0 %418
      %420 = vrot.lane.b32.xlu0 %v392, 96
      %v421 = vpop.permute.xlu0 %420
      %424 = vst.msk [vmem:[#allocation7] sm:$0xff] %vm413, %v419
      %425 = vst.msk [vmem:[#allocation7 + $0x8] sm:$0xff] %vm413, %v421
    $region41: #{tgc_lstm_cell.1} parent=1 // pred_fallthru
      _
    // Predicated region
    $region42: #{tgc_lstm_cell.1} parent=1 // pred_check
      _
    $region43: #{tgc_lstm_cell.1} parent=1 // pred_check_branch
      %427 = sbr.rel (0) target = $region45
    $region44: #{tgc_lstm_cell.1} parent=1 // pred_region
      %s429 = ssub.s32 256, 256
      %430 = vsyncadd [#allocation5], %s429
      %s431 = sshll.u32 [#allocation6], 4
      %s432 = int_to_ptr.vmem [resolvable:$true] %s431
      %437 = dma.vmem_to_hbm [thread:$0]  %s432, 256, %s7, [#allocation5], 128, 128, 8
    $region45: #{tgc_lstm_cell.1} parent=1 // pred_fallthru
      _
    // Predicated region
    $region46: #{tgc_lstm_cell.1} parent=1 // pred_check
      _
    $region47: #{tgc_lstm_cell.1} parent=1 // pred_check_branch
      %439 = sbr.rel (0) target = $region49
    $region48: #{tgc_lstm_cell.1} parent=1 // pred_region
      %s441 = ssub.s32 256, 256
      %442 = vsyncadd [#allocation8], %s441
      %s443 = sshll.u32 [#allocation7], 4
      %s444 = int_to_ptr.vmem [resolvable:$true] %s443
      %449 = dma.vmem_to_hbm [thread:$0]  %s444, 256, %s8, [#allocation8], 128, 128, 8
    $region49: #{tgc_lstm_cell.1} parent=1 // pred_fallthru
      _
    // Predicated region
    $region50: #{tgc_lstm_cell.1} parent=1 // pred_check
      _
    $region51: #{tgc_lstm_cell.1} parent=1 // pred_check_branch
      %451 = sbr.rel (0) target = $region53
    $region52: #{tgc_lstm_cell.1} parent=1 // pred_region
      %452 = dma.done [#allocation5], 256
    $region53: #{tgc_lstm_cell.1} parent=1 // pred_fallthru
      _
    // Predicated region
    $region54: #{tgc_lstm_cell.1} parent=1 // pred_check
      _
    $region55: #{tgc_lstm_cell.1} parent=1 // pred_check_branch
      %454 = sbr.rel (0) target = $region57
    $region56: #{tgc_lstm_cell.1} parent=1 // pred_region
      %455 = dma.done [#allocation8], 256
    $region57: #{tgc_lstm_cell.1} parent=1 // pred_fallthru
      _
    %456 = vsyncpa [#allocation4], 1
    %457 = vsyncpa [#allocation5], 1
    %458 = vsyncpa [#allocation8], 1

</llo_original>
